<compile_context>
chip_gen: v7x
topology: tpu7x:2x2x1
jax: 0.10.0
libtpu: 0.0.40
codegen_flags: <defaults>
</compile_context>

<pallas_src>
from functools import partial

import jax
import jax.numpy as jnp
from jax.experimental import pallas as pl
from jax.experimental.pallas import tpu as pltpu


# ---------------------------------------------------------------------------
# Pallas kernel: single invocation, whole (tiny) working set in VMEM.
#   xg[b*N+n, k*Cin+i] = sum_m supports[k,n,m] * x[b,m,i]        (MXU, bf16->f32)
#   z [b*N+n, d*Cout+o] = sum_{k,i} xg[.,k,i] * wpool[d,k,i,o]   (MXU, f32)
#   out[b*N+n, o] = bias[n,o] + sum_d emb[n,d] * z[., d*Cout+o]  (VPU, f32)
# ---------------------------------------------------------------------------
def agcn_kernel(lhs_ref, rhs_ref, wz_ref, eb_ref, out_ref, *, Cout, D, out_pad):
    """lhs_ref: (B*N, B*K*N)  bf16   block-diag(batch) of node-major supports
       rhs_ref: (B*K*N, K*Cin) bf16  block-diag(k) of x
       wz_ref : (K*Cin, D*Cout) f32  weights_pool reordered to (k,i)x(d,o)
       eb_ref : (B*N, D*Cout+Cout) f32  [emb_exp | bias_exp]
       out_ref: (B*N, out_pad) f32   cols [0, Cout) hold the result"""
    lhs = lhs_ref[...]
    rhs = rhs_ref[...]
    wz = wz_ref[...]
    eb = eb_ref[...]

    # Graph propagation: one MXU matmul whose output is already
    # (batch,node)-major with contiguous (k,i) columns -> no in-kernel
    # slicing / concatenation / transpose.
    xg = jnp.dot(lhs, rhs, preferred_element_type=jnp.float32)     # (B*N, K*Cin) f32

    # (k,i) contraction for ALL batches fused into one matmul; xg stays f32
    # (no second bf16 rounding).
    z = jnp.dot(xg, wz, preferred_element_type=jnp.float32)        # (B*N, D*Cout) f32

    # Embed-dim contraction: out[r,o] = bias[r,o] + sum_d emb[r,d]*z[r,d*Cout+o]
    emb_exp = eb[:, : D * Cout]                                    # aligned static slice
    acc = eb[:, D * Cout: D * Cout + Cout]                         # bias (B*N, Cout)
    t = emb_exp * z                                                # f32 VPU
    for d in range(D):                                             # D static lane-block adds
        acc = acc + t[:, d * Cout: (d + 1) * Cout]

    # Lane-dense (128-multiple) full-width store; wrapper slices back to Cout.
    if out_pad > Cout:
        pad = jnp.zeros((acc.shape[0], out_pad - Cout), dtype=out_ref.dtype)
        out_ref[...] = jnp.concatenate([acc.astype(out_ref.dtype), pad], axis=1)
    else:
        out_ref[...] = acc.astype(out_ref.dtype)


# ---------------------------------------------------------------------------
# Support construction (tiny N x N graph prep) — plain JAX glue, mirrors the
# PyTorch forward exactly.  Batch-invariant, so it stays outside the kernel.
# ---------------------------------------------------------------------------
def build_supports(node_emb, node_vec1, node_vec2, support_static,
                   cheb_k, adjtype, adpadj):
    N = node_emb.shape[0]
    I = jnp.eye(N, dtype=jnp.float32)

    if adpadj == 'bidirection':
        adp = jax.nn.softmax(jax.nn.relu(node_vec1 @ node_vec2), axis=1)
        support_adp = [[I, adp]]
    elif adpadj == 'unidirection':
        adp = jax.nn.softmax(jax.nn.relu(node_emb @ node_emb.T), axis=1)
        support_adp = [[I, adp]]
    else:
        support_adp = None

    if adpadj == 'none':
        supports = support_static
    elif adjtype == 'multi' and adpadj in ('bidirection', 'unidirection'):
        supports = support_adp + support_static
    else:
        supports = support_adp

    out = [I]
    for s in supports:
        support_set = list(s)
        for _k in range(2, cheb_k):
            support_set.append(2.0 * (support_set[1] @ support_set[-1])
                               - support_set[-2])
        out.extend(support_set[1:])
    return jnp.stack(out, axis=0)                                   # (K, N, N)


# ---------------------------------------------------------------------------
# Wrapper: layout plumbing (block-diag operands, packed emb/bias, hoisted
# batch-invariant bias matmul) + single pallas_call.
# ---------------------------------------------------------------------------
def agcn_forward(x, node_emb, node_vec1, node_vec2, support_static,
                 weights_pool, bias_pool, cheb_k, adjtype, adpadj):
    B, N, Cin = x.shape
    D, Kw, _, Cout = weights_pool.shape

    supports = build_supports(node_emb, node_vec1, node_vec2, support_static,
                              cheb_k, adjtype, adpadj)              # (K, N, N) f32
    K = supports.shape[0]
    assert K == Kw, f"supports K={K} must match weights_pool cheb_ks={Kw}"

    # --- wrapper-side layout work (pure re-layout / batch-invariant) ---
    # Node-major supports: sup_nm[n, k*N+m] = supports[k, n, m].
    sup_nm = supports.transpose(1, 0, 2).reshape(N, K * N)
    # Block-diag over batch so the graph-conv matmul emits (B*N, K*Cin) directly.
    lhs_bd = jnp.kron(jnp.eye(B, dtype=supports.dtype), sup_nm).astype(jnp.bfloat16)
    # Block-diag over k: rhs_x[b*K*N + k*N + m, l*Cin + i] = x[b,m,i] * (k == l).
    rhs_x = jnp.einsum('kl,bmi->bkmli', jnp.eye(K, dtype=x.dtype), x)
    rhs_x = rhs_x.reshape(B * K * N, K * Cin).astype(jnp.bfloat16)
    # Weight pool reordered so (k,i) is the contraction and (d,o) the lanes.
    wz = (weights_pool.transpose(1, 2, 0, 3)                        # (k,i,d,o)
          .reshape(K * Cin, D * Cout).astype(jnp.float32))
    # emb expanded so the tail is one elementwise multiply (no broadcasts),
    # packed with the hoisted batch-invariant bias into a single operand.
    emb_exp = jnp.tile(jnp.repeat(node_emb.astype(jnp.float32), Cout, axis=1),
                       (B, 1))                                      # (B*N, D*Cout)
    bias = jnp.matmul(node_emb, bias_pool,
                      precision=jax.lax.Precision.HIGHEST).astype(jnp.float32)
    eb = jnp.concatenate([emb_exp, jnp.tile(bias, (B, 1))], axis=1)  # (B*N, D*Cout+Cout)

    out_pad = max(Cout, ((Cout + 127) // 128) * 128)

    flops = (2 * (B * N) * (B * K * N) * (K * Cin)      # graph conv (incl. structural zeros)
             + 2 * (B * N) * (K * Cin) * (D * Cout)     # (k,i) contraction
             + 2 * (B * N) * (D * Cout))                # embed-dim tail
    bytes_accessed = (lhs_bd.size * 2 + rhs_x.size * 2
                      + (wz.size + eb.size + B * N * out_pad) * 4)

    kernel = partial(agcn_kernel, Cout=Cout, D=D, out_pad=out_pad)

    out2d = pl.pallas_call(
        kernel,
        out_shape=jax.ShapeDtypeStruct((B * N, out_pad), jnp.float32),
        in_specs=[pl.BlockSpec(memory_space=pltpu.MemorySpace.VMEM)] * 4,
        out_specs=pl.BlockSpec(memory_space=pltpu.MemorySpace.VMEM),
        cost_estimate=pl.CostEstimate(flops=flops, transcendentals=0,
                                      bytes_accessed=bytes_accessed),
    )(lhs_bd, rhs_x, wz, eb)

    # (B*N, out_pad) -> (B, N, Cout)
    return out2d[:, :Cout].reshape(B, N, Cout)


# ---------------------------------------------------------------------------
# Pure-JAX f32 reference (mirrors the PyTorch einsums) for verification.
# Explicit HIGHEST precision so the reference is not silently downgraded.
# ---------------------------------------------------------------------------
def agcn_reference(x, node_emb, node_vec1, node_vec2, support_static,
                   weights_pool, bias_pool, cheb_k, adjtype, adpadj):
    hi = jax.lax.Precision.HIGHEST
    supports = build_supports(node_emb, node_vec1, node_vec2, support_static,
                              cheb_k, adjtype, adpadj)
    weights = jnp.einsum('nd,dkio->nkio', node_emb, weights_pool, precision=hi)
    bias = jnp.matmul(node_emb, bias_pool, precision=hi)
    x_g = jnp.einsum('knm,bmc->bknc', supports, x, precision=hi)
    x_g = jnp.transpose(x_g, (0, 2, 1, 3))
    return jnp.einsum('bnki,nkio->bno', x_g, weights, precision=hi) + bias


if __name__ == "__main__":
    # Small, module-consistent shapes.
    B, N, Cin, Cout, D = 2, 16, 4, 32, 8
    cheb_k, adjtype, adpadj = 3, 'multi', 'unidirection'
    n_static = 3
    cheb_ks = 1 + (cheb_k - 1) * 4            # = 9

    key = jax.random.PRNGKey(0)
    keys = jax.random.split(key, 6 + n_static)

    x = jax.random.normal(keys[0], (B, N, Cin), jnp.float32)
    node_emb = jax.random.normal(keys[1], (N, D), jnp.float32)
    node_vec1 = jax.random.normal(keys[2], (N, 10), jnp.float32)   # unused (unidirection)
    node_vec2 = jax.random.normal(keys[3], (10, N), jnp.float32)   # unused (unidirection)
    weights_pool = 0.1 * jax.random.normal(keys[4], (D, cheb_ks, Cin, Cout), jnp.float32)
    bias_pool = 0.1 * jax.random.normal(keys[5], (D, Cout), jnp.float32)

    I_np = jnp.eye(N, dtype=jnp.float32)
    support_static = []
    for i in range(n_static):
        A = jax.nn.relu(jax.random.normal(keys[6 + i], (N, N), jnp.float32))
        A = A / jnp.clip(A.sum(axis=1, keepdims=True), 1e-6)
        support_static.append([I_np, A])

    out = agcn_forward(x, node_emb, node_vec1, node_vec2, support_static,
                       weights_pool, bias_pool, cheb_k, adjtype, adpadj)
    out = jax.block_until_ready(out)

    ref = agcn_reference(x, node_emb, node_vec1, node_vec2, support_static,
                         weights_pool, bias_pool, cheb_k, adjtype, adpadj)

    assert out.shape == (B, N, Cout), out.shape

    # Only the graph-conv matmul runs with bf16 MXU inputs (f32 accumulation);
    # the second quantization was dropped, so the tolerance vs. the f32
    # HIGHEST-precision reference is tighter than the previous revision.
    diff = jnp.abs(out - ref)
    elementwise_ok = bool(jnp.all(diff <= 6e-2 + 2e-2 * jnp.abs(ref)))
    rel_fro = float(jnp.linalg.norm(out - ref) / jnp.linalg.norm(ref))
    if not (elementwise_ok and rel_fro < 1.5e-2):
        raise AssertionError(
            f"mismatch vs f32 reference: max|diff|={float(jnp.max(diff)):.4g}, "
            f"rel_frobenius={rel_fro:.4g}")

    print("KERNEL_OK")
</pallas_src>

<mosaic_0001>
module attributes {stable_mosaic.version = 11 : i64} {
  func.func @agcn_kernel(%arg0: memref<32x288xbf16, #tpu.memory_space<vmem>>, %arg1: memref<288x36xbf16, #tpu.memory_space<vmem>>, %arg2: memref<36x256xf32, #tpu.memory_space<vmem>>, %arg3: memref<32x288xf32, #tpu.memory_space<vmem>>, %arg4: memref<32x128xf32, #tpu.memory_space<vmem>>) attributes {dimension_semantics = [], scalar_prefetch = 0 : i64, scratch_operands = 0 : i64, tpu.core_type = #tpu.core_type<tc>} {
    %c0 = arith.constant 0 : index
    %c0_0 = arith.constant 0 : index
    %0 = vector.load %arg0[%c0, %c0_0] : memref<32x288xbf16, #tpu.memory_space<vmem>>, vector<32x288xbf16>
    %c0_1 = arith.constant 0 : index
    %c0_2 = arith.constant 0 : index
    %1 = vector.load %arg1[%c0_1, %c0_2] : memref<288x36xbf16, #tpu.memory_space<vmem>>, vector<288x36xbf16>
    %c0_3 = arith.constant 0 : index
    %c0_4 = arith.constant 0 : index
    %2 = vector.load %arg2[%c0_3, %c0_4] : memref<36x256xf32, #tpu.memory_space<vmem>>, vector<36x256xf32>
    %c0_5 = arith.constant 0 : index
    %c0_6 = arith.constant 0 : index
    %3 = vector.load %arg3[%c0_5, %c0_6] : memref<32x288xf32, #tpu.memory_space<vmem>>, vector<32x288xf32>
    %cst = arith.constant dense<0.000000e+00> : vector<32x36xf32>
    %4 = tpu.matmul %0, %1, %cst {dimension_numbers = #tpu.dot_dimension_numbers<[1], [0], [0], [1], [0, 0, 1, 1], [], []>} : vector<32x288xbf16>, vector<288x36xbf16>, vector<32x36xf32> -> vector<32x36xf32>
    %cst_7 = arith.constant dense<0.000000e+00> : vector<32x256xf32>
    %5 = tpu.matmul %4, %2, %cst_7 {dimension_numbers = #tpu.dot_dimension_numbers<[1], [0], [0], [1], [0, 0, 1, 1], [], []>} : vector<32x36xf32>, vector<36x256xf32>, vector<32x256xf32> -> vector<32x256xf32>
    %6 = vector.extract_strided_slice %3 {offsets = [0, 0], sizes = [32, 256], strides = [1, 1]} : vector<32x288xf32> to vector<32x256xf32>
    %7 = vector.extract_strided_slice %3 {offsets = [0, 256], sizes = [32, 32], strides = [1, 1]} : vector<32x288xf32> to vector<32x32xf32>
    %8 = arith.mulf %6, %5 : vector<32x256xf32>
    %9 = vector.extract_strided_slice %8 {offsets = [0, 0], sizes = [32, 32], strides = [1, 1]} : vector<32x256xf32> to vector<32x32xf32>
    %10 = arith.addf %7, %9 : vector<32x32xf32>
    %11 = vector.extract_strided_slice %8 {offsets = [0, 32], sizes = [32, 32], strides = [1, 1]} : vector<32x256xf32> to vector<32x32xf32>
    %12 = arith.addf %10, %11 : vector<32x32xf32>
    %13 = vector.extract_strided_slice %8 {offsets = [0, 64], sizes = [32, 32], strides = [1, 1]} : vector<32x256xf32> to vector<32x32xf32>
    %14 = arith.addf %12, %13 : vector<32x32xf32>
    %15 = vector.extract_strided_slice %8 {offsets = [0, 96], sizes = [32, 32], strides = [1, 1]} : vector<32x256xf32> to vector<32x32xf32>
    %16 = arith.addf %14, %15 : vector<32x32xf32>
    %17 = vector.extract_strided_slice %8 {offsets = [0, 128], sizes = [32, 32], strides = [1, 1]} : vector<32x256xf32> to vector<32x32xf32>
    %18 = arith.addf %16, %17 : vector<32x32xf32>
    %19 = vector.extract_strided_slice %8 {offsets = [0, 160], sizes = [32, 32], strides = [1, 1]} : vector<32x256xf32> to vector<32x32xf32>
    %20 = arith.addf %18, %19 : vector<32x32xf32>
    %21 = vector.extract_strided_slice %8 {offsets = [0, 192], sizes = [32, 32], strides = [1, 1]} : vector<32x256xf32> to vector<32x32xf32>
    %22 = arith.addf %20, %21 : vector<32x32xf32>
    %23 = vector.extract_strided_slice %8 {offsets = [0, 224], sizes = [32, 32], strides = [1, 1]} : vector<32x256xf32> to vector<32x32xf32>
    %24 = arith.addf %22, %23 : vector<32x32xf32>
    %cst_8 = arith.constant 0.000000e+00 : f32
    %25 = vector.broadcast %cst_8 : f32 to vector<32x96xf32>
    %26 = tpu.concatenate %24, %25 in 1 : vector<32x32xf32>, vector<32x96xf32> -> vector<32x128xf32>
    %c0_9 = arith.constant 0 : index
    %c0_10 = arith.constant 0 : index
    %27 = vector.load %arg4[%c0_9, %c0_10] : memref<32x128xf32, #tpu.memory_space<vmem>>, vector<32x128xf32>
    tpu.vector_store %arg4[%c0_9, %c0_10], %26 {strides = array<i32>} : memref<32x128xf32, #tpu.memory_space<vmem>>, vector<32x128xf32>,
    return
  }
}

</mosaic_0001>

<llo_original>
// kernel: tpu_custom_call.1
$region0: #{tpu_custom_call.1}
  #allocation0 [shape = 'u32[]', space=smem, size = 0x4, offset = 0x4, fixed_abs, tag = 'smem constant byte address 0x4 - core index']
  #allocation1 [shape = 'u32[144,128]{1,0:T(1,128)}', space=vmem, size = 0x12000, scoped, tag = 'internal scratch']
  %s0 = inlined_call_operand.hbm [shape: bf16[32,288], index: 0, kind: input, shape index: {}]
  %s1 = inlined_call_operand.vmem [shape: bf16[288,36], index: 1, kind: input, shape index: {}]
  %s2 = inlined_call_operand.vmem [shape: f32[36,256], index: 2, kind: input, shape index: {}]
  %s3 = inlined_call_operand.vmem [shape: f32[32,288], index: 3, kind: input, shape index: {}]
  %s4 = inlined_call_operand.hbm [shape: f32[32,128], index: 4, kind: output, shape index: {}]
  %s5 = sld [smem:[#allocation0]]
  $region30: #{tpu_custom_call.1} parent=0
    _
  %s7 = ssub.s32 1, %s5
  %s8 = scalar_select 0, %s7, %s5
  $region1: #{tpu_custom_call.1} parent=0
    #allocation2 [shape = 'u8[24576]{0}', space=vmem, size = 0x6000, scoped, tag = 'input window, operand 0, single buffered']
    #allocation3 [shape = 's32[1]{0}', space=sflag, size = 0x4, scoped, tag = 'scoped memory for tpu_custom_call.1']
    #allocation4 [shape = 's32[1]{0}', space=sflag, size = 0x4, scoped, tag = 'scoped memory for tpu_custom_call.1']
    #allocation5 [shape = 'u8[16384]{0}', space=vmem, size = 0x4000, scoped, tag = 'output window, operand 0, single buffered']
    %9 = vsyncpa [#allocation3], 0
    %10 = vsyncpa [#allocation4], 0
    // Predicated region
    $region2: #{tpu_custom_call.1} parent=1 // pred_check
      _
    $region3: #{tpu_custom_call.1} parent=1 // pred_check_branch
      %12 = sbr.rel (0) target = $region5
    $region4: #{tpu_custom_call.1} parent=1 // pred_region
      %s14 = ssub.s32 768, 768
      %15 = vsyncadd [#allocation3], %s14
      %s16 = sshll.u32 [#allocation2], 4
      %s17 = int_to_ptr.vmem [resolvable:$true] %s16
      %22 = dma.hbm_to_vmem [thread:$0]  %s0, 768, %s17, [#allocation3], 192, 192, 12
    $region5: #{tpu_custom_call.1} parent=1 // pred_fallthru
      _
    // Predicated region
    $region6: #{tpu_custom_call.1} parent=1 // pred_check
      _
    $region7: #{tpu_custom_call.1} parent=1 // pred_check_branch
      %24 = sbr.rel (0) target = $region9
    $region8: #{tpu_custom_call.1} parent=1 // pred_region
      _
    $region9: #{tpu_custom_call.1} parent=1 // pred_fallthru
      _
    // Predicated region
    $region10: #{tpu_custom_call.1} parent=1 // pred_check
      _
    $region11: #{tpu_custom_call.1} parent=1 // pred_check_branch
      %26 = sbr.rel (0) target = $region13
    $region12: #{tpu_custom_call.1} parent=1 // pred_region
      _
    $region13: #{tpu_custom_call.1} parent=1 // pred_fallthru
      _
    // Predicated region
    $region14: #{tpu_custom_call.1} parent=1 // pred_check
      _
    $region15: #{tpu_custom_call.1} parent=1 // pred_check_branch
      %28 = sbr.rel (0) target = $region17
    $region16: #{tpu_custom_call.1} parent=1 // pred_region
      _
    $region17: #{tpu_custom_call.1} parent=1 // pred_fallthru
      _
    // Predicated region
    $region18: #{tpu_custom_call.1} parent=1 // pred_check
      _
    $region19: #{tpu_custom_call.1} parent=1 // pred_check_branch
      %30 = sbr.rel (0) target = $region21
    $region20: #{tpu_custom_call.1} parent=1 // pred_region
      %31 = dma.done [#allocation3], 768
    $region21: #{tpu_custom_call.1} parent=1 // pred_fallthru
      _
    %v33 = vld [vmem:[#allocation2] sm:$0xff]
    %v34 = vld [vmem:[#allocation2 + $0x8] sm:$0xf]
    %v35 = vld [vmem:[#allocation2 + $0xc] sm:$0xff]
    %v36 = vld [vmem:[#allocation2 + $0x14] sm:$0xf]
    %v37 = vld [vmem:[#allocation2 + $0x18] sm:$0xff]
    %v38 = vld [vmem:[#allocation2 + $0x20] sm:$0xf]
    %v39 = vld [vmem:[#allocation2 + $0x24] sm:$0xff]
    %v40 = vld [vmem:[#allocation2 + $0x2c] sm:$0xf]
    %v41 = vld [vmem:[%s1] sm:$0xf]
    %v42 = vld [vmem:[%s1 + $0x4] sm:$0xf]
    %v43 = vld [vmem:[%s1 + $0x8] sm:$0xf]
    %v44 = vld [vmem:[%s1 + $0xc] sm:$0xf]
    %v45 = vld [vmem:[%s1 + $0x10] sm:$0xf]
    %v46 = vld [vmem:[%s1 + $0x14] sm:$0xf]
    %v47 = vld [vmem:[%s1 + $0x18] sm:$0xf]
    %v48 = vld [vmem:[%s1 + $0x1c] sm:$0xf]
    %v49 = vld [vmem:[%s1 + $0x20] sm:$0xf]
    %v50 = vld [vmem:[%s1 + $0x24] sm:$0xf]
    %v51 = vld [vmem:[%s1 + $0x28] sm:$0xf]
    %v52 = vld [vmem:[%s1 + $0x2c] sm:$0xf]
    %v53 = vld [vmem:[%s1 + $0x30] sm:$0xf]
    %v54 = vld [vmem:[%s1 + $0x34] sm:$0xf]
    %v55 = vld [vmem:[%s1 + $0x38] sm:$0xf]
    %v56 = vld [vmem:[%s1 + $0x3c] sm:$0xf]
    %v57 = vld [vmem:[%s1 + $0x40] sm:$0xf]
    %v58 = vld [vmem:[%s1 + $0x44] sm:$0xf]
    %v59 = vld [vmem:[%s1 + $0x48] sm:$0xf]
    %v60 = vld [vmem:[%s1 + $0x4c] sm:$0xf]
    %v61 = vld [vmem:[%s1 + $0x50] sm:$0xf]
    %v62 = vld [vmem:[%s1 + $0x54] sm:$0xf]
    %v63 = vld [vmem:[%s1 + $0x58] sm:$0xf]
    %v64 = vld [vmem:[%s1 + $0x5c] sm:$0xf]
    %v65 = vld [vmem:[%s1 + $0x60] sm:$0xf]
    %v66 = vld [vmem:[%s1 + $0x64] sm:$0xf]
    %v67 = vld [vmem:[%s1 + $0x68] sm:$0xf]
    %v68 = vld [vmem:[%s1 + $0x6c] sm:$0xf]
    %v69 = vld [vmem:[%s1 + $0x70] sm:$0xf]
    %v70 = vld [vmem:[%s1 + $0x74] sm:$0xf]
    %v71 = vld [vmem:[%s1 + $0x78] sm:$0xf]
    %v72 = vld [vmem:[%s1 + $0x7c] sm:$0xf]
    %v73 = vld [vmem:[%s1 + $0x80] sm:$0xf]
    %v74 = vld [vmem:[%s1 + $0x84] sm:$0xf]
    %v75 = vld [vmem:[%s1 + $0x88] sm:$0xf]
    %v76 = vld [vmem:[%s1 + $0x8c] sm:$0xf]
    %v77 = vld [vmem:[%s2] sm:$0xff]
    %v78 = vld [vmem:[%s2 + $0x8] sm:$0xff]
    %v79 = vld [vmem:[%s2 + $0x10] sm:$0xff]
    %v80 = vld [vmem:[%s2 + $0x18] sm:$0xff]
    %v81 = vld [vmem:[%s2 + $0x20] sm:$0xff]
    %v82 = vld [vmem:[%s2 + $0x28] sm:$0xff]
    %v83 = vld [vmem:[%s2 + $0x30] sm:$0xff]
    %v84 = vld [vmem:[%s2 + $0x38] sm:$0xff]
    %v85 = vld [vmem:[%s2 + $0x40] sm:$0xf]
    %v86 = vld [vmem:[%s2 + $0x48] sm:$0xf]
    %v87 = vld [vmem:[%s3] sm:$0xff]
    %v88 = vld [vmem:[%s3 + $0x8] sm:$0xff]
    %v89 = vld [vmem:[%s3 + $0x10] sm:$0xff]
    %v90 = vld [vmem:[%s3 + $0x18] sm:$0xff]
    %v91 = vld [vmem:[%s3 + $0x20] sm:$0xff]
    %v92 = vld [vmem:[%s3 + $0x28] sm:$0xff]
    %v93 = vld [vmem:[%s3 + $0x30] sm:$0xff]
    %v94 = vld [vmem:[%s3 + $0x38] sm:$0xff]
    %v95 = vld [vmem:[%s3 + $0x40] sm:$0xff]
    %v96 = vld [vmem:[%s3 + $0x48] sm:$0xff]
    %v97 = vld [vmem:[%s3 + $0x50] sm:$0xff]
    %v98 = vld [vmem:[%s3 + $0x58] sm:$0xff]
    %v107 = vunpack.c.l.b16 %v33
    %v108 = vunpack.c.h.b16 %v33
    %v109 = vunpack.c.l.b16 %v34
    %v110 = vunpack.c.l.b16 %v35
    %v111 = vunpack.c.h.b16 %v35
    %v112 = vunpack.c.l.b16 %v36
    %v113 = vunpack.c.l.b16 %v37
    %v114 = vunpack.c.h.b16 %v37
    %v115 = vunpack.c.l.b16 %v38
    %v116 = vunpack.c.l.b16 %v39
    %v117 = vunpack.c.h.b16 %v39
    %v118 = vunpack.c.l.b16 %v40
    %v119 = vpack.c.b16 %v110, %v107
    %v120 = vpack.c.b16 %v111, %v108
    %v121 = vpack.c.b16 %v112, %v109
    %v122 = vpack.c.b16 %v116, %v113
    %v123 = vpack.c.b16 %v117, %v114
    %v124 = vpack.c.b16 %v118, %v115
    %v165 = vunpack.c.l.b16 %v41
    %v166 = vunpack.c.l.b16 %v42
    %v167 = vunpack.c.l.b16 %v43
    %v168 = vunpack.c.l.b16 %v44
    %v169 = vunpack.c.l.b16 %v45
    %v170 = vunpack.c.l.b16 %v46
    %v171 = vunpack.c.l.b16 %v47
    %v172 = vunpack.c.l.b16 %v48
    %v173 = vunpack.c.l.b16 %v49
    %v174 = vunpack.c.l.b16 %v50
    %v175 = vunpack.c.l.b16 %v51
    %v176 = vunpack.c.l.b16 %v52
    %v177 = vunpack.c.l.b16 %v53
    %v178 = vunpack.c.l.b16 %v54
    %v179 = vunpack.c.l.b16 %v55
    %v180 = vunpack.c.l.b16 %v56
    %v181 = vunpack.c.l.b16 %v57
    %v182 = vunpack.c.l.b16 %v58
    %v183 = vunpack.c.l.b16 %v59
    %v184 = vunpack.c.l.b16 %v60
    %v185 = vunpack.c.l.b16 %v61
    %v186 = vunpack.c.l.b16 %v62
    %v187 = vunpack.c.l.b16 %v63
    %v188 = vunpack.c.l.b16 %v64
    %v189 = vunpack.c.l.b16 %v65
    %v190 = vunpack.c.l.b16 %v66
    %v191 = vunpack.c.l.b16 %v67
    %v192 = vunpack.c.l.b16 %v68
    %v193 = vunpack.c.l.b16 %v69
    %v194 = vunpack.c.l.b16 %v70
    %v195 = vunpack.c.l.b16 %v71
    %v196 = vunpack.c.l.b16 %v72
    %v197 = vunpack.c.l.b16 %v73
    %v198 = vunpack.c.l.b16 %v74
    %v199 = vunpack.c.l.b16 %v75
    %v200 = vunpack.c.l.b16 %v76
    %v201 = vpack.c.b16 %v166, %v165
    %v202 = vpack.c.b16 %v168, %v167
    %v203 = vpack.c.b16 %v170, %v169
    %v204 = vpack.c.b16 %v172, %v171
    %v205 = vpack.c.b16 %v174, %v173
    %v206 = vpack.c.b16 %v176, %v175
    %v207 = vpack.c.b16 %v178, %v177
    %v208 = vpack.c.b16 %v180, %v179
    %v209 = vpack.c.b16 %v182, %v181
    %v210 = vpack.c.b16 %v184, %v183
    %v211 = vpack.c.b16 %v186, %v185
    %v212 = vpack.c.b16 %v188, %v187
    %v213 = vpack.c.b16 %v190, %v189
    %v214 = vpack.c.b16 %v192, %v191
    %v215 = vpack.c.b16 %v194, %v193
    %v216 = vpack.c.b16 %v196, %v195
    %v217 = vpack.c.b16 %v198, %v197
    %v218 = vpack.c.b16 %v200, %v199
    %vm237 = vcmask 261120
    %v239 = vsel %vm237, %v121, 0
    %v242 = vsel %vm237, %v124, 0
    %244 = vmatprep.subr.bf16.mxu0 0
    %245 = vmatpush1.bf16.msra.mxu0 %v201
    %246 = vmatprep.subr.bf16.mxu0 0
    %247 = vmatpush1.bf16.msra.mxu0 %v202
    %248 = vmatprep.subr.bf16.mxu0 0
    %249 = vmatpush1.bf16.msra.mxu0 %v203
    %250 = vmatprep.subr.bf16.mxu0 0
    %251 = vmatpush1.bf16.msra.mxu0 %v204
    %252 = vmatprep.subr.bf16.mxu0 0
    %253 = vmatpush1.bf16.msra.mxu0 %v205
    %254 = vmatprep.subr.bf16.mxu0 0
    %255 = vmatpush1.bf16.msra.mxu0 %v206
    %256 = vmatprep.subr.bf16.mxu0 0
    %257 = vmatpush1.bf16.msra.mxu0 %v207
    %258 = vmatprep.subr.bf16.mxu0 0
    %259 = vmatpush1.bf16.msra.mxu0 %v208
    %260 = vmatprep.subr.bf16.mxu0 0
    %261 = vmatpush1.bf16.msra.mxu0 %v209
    %262 = vmatprep.subr.bf16.mxu0 0
    %263 = vmatpush1.bf16.msra.mxu0 %v210
    %264 = vmatprep.subr.bf16.mxu0 0
    %265 = vmatpush1.bf16.msra.mxu0 %v211
    %266 = vmatprep.subr.bf16.mxu0 0
    %267 = vmatpush1.bf16.msra.mxu0 %v212
    %268 = vmatprep.subr.bf16.mxu0 0
    %269 = vmatpush1.bf16.msra.mxu0 %v213
    %270 = vmatprep.subr.bf16.mxu0 0
    %271 = vmatpush1.bf16.msra.mxu0 %v214
    %272 = vmatprep.subr.bf16.mxu0 0
    %273 = vmatpush1.bf16.msra.mxu0 %v215
    %274 = vmatprep.subr.bf16.mxu0 0
    %275 = vmatpush1.bf16.msra.mxu0 %v216
    %276 = vmatprep.mubr.bf16.mxu0 %v120
    %277 = vmatmul.mubr.bf16.gmra.mrb[0].mxu0 %v119
    %v278 = vpop.f32.mrb[0].mxu0
    %v279 = vadd.f32 0.0, %v278
    %v280 = vpop.f32.mrb[0].mxu0
    %v281 = vpop.f32.mrb[0].mxu0
    %v282 = vadd.f32 0.0, %v281
    %v283 = vpop.f32.mrb[0].mxu0
    %284 = vmatprep.mubr.bf16.mxu0 %v123
    %285 = vmatmul.mubr.bf16.gmra.mrb[0].mxu0 %v122
    %v286 = vpop.f32.mrb[0].mxu0
    %v287 = vadd.f32 0.0, %v286
    %v288 = vpop.f32.mrb[0].mxu0
    %v289 = vpop.f32.mrb[0].mxu0
    %v290 = vadd.f32 0.0, %v289
    %v291 = vpop.f32.mrb[0].mxu0
    %292 = vdwg.mxu0
    %293 = vmatprep.subr.bf16.mxu0 0
    %294 = vmatpush1.bf16.msra.mxu0 %v217
    %295 = vmatprep.subr.bf16.mxu0 0
    %296 = vmatpush1.bf16.msra.mxu0 %v218
    %297 = vmatprep.subr.bf16.mxu0 0
    %298 = vmatpush1.bf16.msra.mxu0 0
    %299 = vmatprep.subr.bf16.mxu0 0
    %300 = vmatpush1.bf16.msra.mxu0 0
    %301 = vmatprep.subr.bf16.mxu0 0
    %302 = vmatpush1.bf16.msra.mxu0 0
    %303 = vmatprep.subr.bf16.mxu0 0
    %304 = vmatpush1.bf16.msra.mxu0 0
    %305 = vmatprep.subr.bf16.mxu0 0
    %306 = vmatpush1.bf16.msra.mxu0 0
    %307 = vmatprep.subr.bf16.mxu0 0
    %308 = vmatpush1.bf16.msra.mxu0 0
    %309 = vmatprep.subr.bf16.mxu0 0
    %310 = vmatpush1.bf16.msra.mxu0 0
    %311 = vmatprep.subr.bf16.mxu0 0
    %312 = vmatpush1.bf16.msra.mxu0 0
    %313 = vmatprep.subr.bf16.mxu0 0
    %314 = vmatpush1.bf16.msra.mxu0 0
    %315 = vmatprep.subr.bf16.mxu0 0
    %316 = vmatpush1.bf16.msra.mxu0 0
    %317 = vmatprep.subr.bf16.mxu0 0
    %318 = vmatpush1.bf16.msra.mxu0 0
    %319 = vmatprep.subr.bf16.mxu0 0
    %320 = vmatpush1.bf16.msra.mxu0 0
    %321 = vmatprep.subr.bf16.mxu0 0
    %322 = vmatpush1.bf16.msra.mxu0 0
    %323 = vmatprep.subr.bf16.mxu0 0
    %324 = vmatpush1.bf16.msra.mxu0 0
    %325 = vmatprep.mubr.bf16.mxu0 0
    %326 = vmatmul.mubr.bf16.gmra.mrb[0].mxu0 %v239
    %v327 = vpop.f32.mrb[0].mxu0
    %v328 = vadd.f32 %v279, %v327
    %v329 = vpop.f32.mrb[0].mxu0
    %v330 = vpop.f32.mrb[0].mxu0
    %v331 = vadd.f32 %v282, %v330
    %v332 = vpop.f32.mrb[0].mxu0
    %333 = vmatprep.mubr.bf16.mxu0 0
    %334 = vmatmul.mubr.bf16.gmra.mrb[0].mxu0 %v242
    %v335 = vpop.f32.mrb[0].mxu0
    %v336 = vadd.f32 %v287, %v335
    %v337 = vpop.f32.mrb[0].mxu0
    %v338 = vpop.f32.mrb[0].mxu0
    %v339 = vadd.f32 %v290, %v338
    %v340 = vpop.f32.mrb[0].mxu0
    %341 = vdwg.mxu0
    %vm342 = vcmask 293888
    %v344 = vsel %vm342, %v328, 0
    %v347 = vsel %vm342, %v331, 0
    %v350 = vsel %vm342, %v336, 0
    %v353 = vsel %vm342, %v339, 0
    %vm355 = vcmask 1043456
    %v357 = vsel %vm355, %v85, 0
    %v360 = vsel %vm355, %v86, 0
    %362 = vmatprep.subr.mxu0 %v78
    %363 = vmatpush1.msra.mxu0 %v77
    %364 = vmatprep.subr.mxu0 %v80
    %365 = vmatpush1.msra.mxu0 %v79
    %366 = vmatprep.subr.mxu0 %v82
    %367 = vmatpush1.msra.mxu0 %v81
    %368 = vmatprep.subr.mxu0 %v84
    %369 = vmatpush1.msra.mxu0 %v83
    %370 = vmatprep.subr.mxu0 %v360
    %371 = vmatpush1.msra.mxu0 %v357
    %372 = vmatprep.subr.mxu0 0.0
    %373 = vmatpush1.msra.mxu0 0.0
    %374 = vmatprep.subr.mxu0 0.0
    %375 = vmatpush1.msra.mxu0 0.0
    %376 = vmatprep.subr.mxu0 0.0
    %377 = vmatpush1.msra.mxu0 0.0
    %378 = vmatprep.subr.mxu0 0.0
    %379 = vmatpush1.msra.mxu0 0.0
    %380 = vmatprep.subr.mxu0 0.0
    %381 = vmatpush1.msra.mxu0 0.0
    %382 = vmatprep.subr.mxu0 0.0
    %383 = vmatpush1.msra.mxu0 0.0
    %384 = vmatprep.subr.mxu0 0.0
    %385 = vmatpush1.msra.mxu0 0.0
    %386 = vmatprep.subr.mxu0 0.0
    %387 = vmatpush1.msra.mxu0 0.0
    %388 = vmatprep.subr.mxu0 0.0
    %389 = vmatpush1.msra.mxu0 0.0
    %390 = vmatprep.subr.mxu0 0.0
    %391 = vmatpush1.msra.mxu0 0.0
    %392 = vmatprep.subr.mxu0 0.0
    %393 = vmatpush1.msra.mxu0 0.0
    %394 = vmatprep.subr.mxu0 0.0
    %395 = vmatpush1.msra.mxu0 0.0
    %396 = vmatprep.subr.mxu0 0.0
    %397 = vmatpush1.msra.mxu0 0.0
    %398 = vmatprep.subr.mxu0 0.0
    %399 = vmatpush1.msra.mxu0 0.0
    %400 = vmatprep.subr.mxu0 0.0
    %401 = vmatpush1.msra.mxu0 0.0
    %402 = vmatprep.subr.mxu0 0.0
    %403 = vmatpush1.msra.mxu0 0.0
    %404 = vmatprep.subr.mxu0 0.0
    %405 = vmatpush1.msra.mxu0 0.0
    %406 = vmatprep.subr.mxu0 0.0
    %407 = vmatpush1.msra.mxu0 0.0
    %408 = vmatprep.subr.mxu0 0.0
    %409 = vmatpush1.msra.mxu0 0.0
    %410 = vmatprep.subr.mxu0 0.0
    %411 = vmatpush1.msra.mxu0 0.0
    %412 = vmatprep.subr.mxu0 0.0
    %413 = vmatpush1.msra.mxu0 0.0
    %414 = vmatprep.subr.mxu0 0.0
    %415 = vmatpush1.msra.mxu0 0.0
    %416 = vmatprep.subr.mxu0 0.0
    %417 = vmatpush1.msra.mxu0 0.0
    %418 = vmatprep.subr.mxu0 0.0
    %419 = vmatpush1.msra.mxu0 0.0
    %420 = vmatprep.subr.mxu0 0.0
    %421 = vmatpush1.msra.mxu0 0.0
    %422 = vmatprep.subr.mxu0 0.0
    %423 = vmatpush1.msra.mxu0 0.0
    %424 = vmatprep.subr.mxu0 0.0
    %425 = vmatpush1.msra.mxu0 0.0
    %426 = vmatprep.mubr.f32.mxu0 0.0
    %427 = vmatmul.mubr.f32.gmra.mrb[0].mxu0 %v344
    %v428 = vpop.f32.mrb[0].mxu0
    %v429 = vadd.f32 0.0, %v428
    %v430 = vpop.f32.mrb[0].mxu0
    %v431 = vadd.f32 0.0, %v430
    %432 = vmatprep.mubr.f32.mxu0 0.0
    %433 = vmatmul.mubr.f32.gmra.mrb[0].mxu0 %v347
    %v434 = vpop.f32.mrb[0].mxu0
    %v435 = vadd.f32 0.0, %v434
    %v436 = vpop.f32.mrb[0].mxu0
    %v437 = vadd.f32 0.0, %v436
    %438 = vmatprep.mubr.f32.mxu0 0.0
    %439 = vmatmul.mubr.f32.gmra.mrb[0].mxu0 %v350
    %v440 = vpop.f32.mrb[0].mxu0
    %v441 = vadd.f32 0.0, %v440
    %v442 = vpop.f32.mrb[0].mxu0
    %v443 = vadd.f32 0.0, %v442
    %444 = vmatprep.mubr.f32.mxu0 0.0
    %445 = vmatmul.mubr.f32.gmra.mrb[0].mxu0 %v353
    %v446 = vpop.f32.mrb[0].mxu0
    %v447 = vadd.f32 0.0, %v446
    %v448 = vpop.f32.mrb[0].mxu0
    %v449 = vadd.f32 0.0, %v448
    %450 = vdwg.mxu0
    %v451 = vmul.f32 %v87, %v429
    %v452 = vmul.f32 %v88, %v431
    %v453 = vmul.f32 %v90, %v435
    %v454 = vmul.f32 %v91, %v437
    %v455 = vmul.f32 %v93, %v441
    %v456 = vmul.f32 %v94, %v443
    %v457 = vmul.f32 %v96, %v447
    %v458 = vmul.f32 %v97, %v449
    %v459 = vadd.f32 %v89, %v451
    %v460 = vadd.f32 %v92, %v453
    %v461 = vadd.f32 %v95, %v455
    %v462 = vadd.f32 %v98, %v457
    %467 = vrot.lane.b32.xlu0 %v451, 96
    %v468 = vpop.permute.xlu0 %467
    %469 = vrot.lane.b32.xlu0 %v453, 96
    %v470 = vpop.permute.xlu0 %469
    %471 = vrot.lane.b32.xlu0 %v455, 96
    %v472 = vpop.permute.xlu0 %471
    %473 = vrot.lane.b32.xlu0 %v457, 96
    %v474 = vpop.permute.xlu0 %473
    %v479 = vadd.f32 %v459, %v468
    %v480 = vadd.f32 %v460, %v470
    %v481 = vadd.f32 %v461, %v472
    %v482 = vadd.f32 %v462, %v474
    %483 = vrot.lane.b32.xlu0 %v451, 64
    %v484 = vpop.permute.xlu0 %483
    %485 = vrot.lane.b32.xlu0 %v453, 64
    %v486 = vpop.permute.xlu0 %485
    %487 = vrot.lane.b32.xlu0 %v455, 64
    %v488 = vpop.permute.xlu0 %487
    %489 = vrot.lane.b32.xlu0 %v457, 64
    %v490 = vpop.permute.xlu0 %489
    %v495 = vadd.f32 %v479, %v484
    %v496 = vadd.f32 %v480, %v486
    %v497 = vadd.f32 %v481, %v488
    %v498 = vadd.f32 %v482, %v490
    %499 = vrot.lane.b32.xlu0 %v451, 32
    %v500 = vpop.permute.xlu0 %499
    %501 = vrot.lane.b32.xlu0 %v453, 32
    %v502 = vpop.permute.xlu0 %501
    %503 = vrot.lane.b32.xlu0 %v455, 32
    %v504 = vpop.permute.xlu0 %503
    %505 = vrot.lane.b32.xlu0 %v457, 32
    %v506 = vpop.permute.xlu0 %505
    %v511 = vadd.f32 %v495, %v500
    %v512 = vadd.f32 %v496, %v502
    %v513 = vadd.f32 %v497, %v504
    %v514 = vadd.f32 %v498, %v506
    %v515 = vadd.f32 %v511, %v452
    %v516 = vadd.f32 %v512, %v454
    %v517 = vadd.f32 %v513, %v456
    %v518 = vadd.f32 %v514, %v458
    %523 = vrot.lane.b32.xlu0 %v452, 96
    %v524 = vpop.permute.xlu0 %523
    %525 = vrot.lane.b32.xlu0 %v454, 96
    %v526 = vpop.permute.xlu0 %525
    %527 = vrot.lane.b32.xlu0 %v456, 96
    %v528 = vpop.permute.xlu0 %527
    %529 = vrot.lane.b32.xlu0 %v458, 96
    %v530 = vpop.permute.xlu0 %529
    %v535 = vadd.f32 %v515, %v524
    %v536 = vadd.f32 %v516, %v526
    %v537 = vadd.f32 %v517, %v528
    %v538 = vadd.f32 %v518, %v530
    %539 = vrot.lane.b32.xlu0 %v452, 64
    %v540 = vpop.permute.xlu0 %539
    %541 = vrot.lane.b32.xlu0 %v454, 64
    %v542 = vpop.permute.xlu0 %541
    %543 = vrot.lane.b32.xlu0 %v456, 64
    %v544 = vpop.permute.xlu0 %543
    %545 = vrot.lane.b32.xlu0 %v458, 64
    %v546 = vpop.permute.xlu0 %545
    %v551 = vadd.f32 %v535, %v540
    %v552 = vadd.f32 %v536, %v542
    %v553 = vadd.f32 %v537, %v544
    %v554 = vadd.f32 %v538, %v546
    %555 = vrot.lane.b32.xlu0 %v452, 32
    %v556 = vpop.permute.xlu0 %555
    %557 = vrot.lane.b32.xlu0 %v454, 32
    %v558 = vpop.permute.xlu0 %557
    %559 = vrot.lane.b32.xlu0 %v456, 32
    %v560 = vpop.permute.xlu0 %559
    %561 = vrot.lane.b32.xlu0 %v458, 32
    %v562 = vpop.permute.xlu0 %561
    %v567 = vadd.f32 %v551, %v556
    %v568 = vadd.f32 %v552, %v558
    %v569 = vadd.f32 %v553, %v560
    %v570 = vadd.f32 %v554, %v562
    %v571 = vsel %vm237, %v567, 0.0
    %v572 = vsel %vm237, %v568, 0.0
    %v573 = vsel %vm237, %v569, 0.0
    %v574 = vsel %vm237, %v570, 0.0
    %575 = vst [vmem:[#allocation5] sm:$0xff] %v571
    %576 = vst [vmem:[#allocation5 + $0x8] sm:$0xff] %v572
    %577 = vst [vmem:[#allocation5 + $0x10] sm:$0xff] %v573
    %578 = vst [vmem:[#allocation5 + $0x18] sm:$0xff] %v574
    // Predicated region
    $region22: #{tpu_custom_call.1} parent=1 // pred_check
      _
    $region23: #{tpu_custom_call.1} parent=1 // pred_check_branch
      %580 = sbr.rel (0) target = $region25
    $region24: #{tpu_custom_call.1} parent=1 // pred_region
      %s582 = ssub.s32 512, 512
      %583 = vsyncadd [#allocation4], %s582
      %s584 = sshll.u32 [#allocation5], 4
      %s585 = int_to_ptr.vmem [resolvable:$true] %s584
      %590 = dma.vmem_to_hbm [thread:$0]  %s585, 512, %s4, [#allocation4], 128, 128, 8
    $region25: #{tpu_custom_call.1} parent=1 // pred_fallthru
      _
    // Predicated region
    $region26: #{tpu_custom_call.1} parent=1 // pred_check
      _
    $region27: #{tpu_custom_call.1} parent=1 // pred_check_branch
      %592 = sbr.rel (0) target = $region29
    $region28: #{tpu_custom_call.1} parent=1 // pred_region
      %593 = dma.done [#allocation4], 512
    $region29: #{tpu_custom_call.1} parent=1 // pred_fallthru
      _
    %594 = vsyncpa [#allocation3], 1
    %595 = vsyncpa [#allocation4], 1

</llo_original>
